<compile_context>
chip_gen: v7x
topology: tpu7x:2x2x1
jax: 0.10.0
libtpu: 0.0.40
codegen_flags: <defaults>
</compile_context>

<pallas_src>
import functools

import jax
import jax.numpy as jnp
import numpy as np
from jax.experimental import pallas as pl
from jax.experimental.pallas import tpu as pltpu

NUM_CLASSES = 200
TAU = 3.0
BETA = 1.0


def ntd_loss_kernel(local_ref, global_ref, tgt_ref, out_ref, *,
                    tau, beta, batch_total):
    """One batch tile: emits the tile's un-normalized (CE + beta*tau^2*KL) sum."""
    i = pl.program_id(0)

    local = local_ref[...].astype(jnp.float32)   # (TB, C)
    glob = global_ref[...].astype(jnp.float32)   # (TB, C)
    tgt = tgt_ref[...]                           # (TB, 1) int32
    TB, C = local.shape
    inv_tau = jnp.float32(1.0 / tau)

    col = jax.lax.broadcasted_iota(jnp.int32, (TB, C), 1)
    is_true = col == tgt                         # (TB, C)

    # Target-column logit of the local model (only needed for the CE term).
    tgt_local = jnp.sum(jnp.where(is_true, local, 0.0), axis=1, keepdims=True)

    # ----------------- Cross-entropy over the full class set -----------------
    m_all = jnp.max(local, axis=1, keepdims=True)
    d_l = local - m_all                                      # reused below
    s_all = jnp.sum(jnp.exp(d_l), axis=1, keepdims=True)
    ce_row = (m_all + jnp.log(s_all)) - tgt_local            # (TB, 1)

    # --------- Not-true distillation: masked single-pass normalizers ---------
    # The target column is zeroed BEFORE the exp-sum (no subtraction of the
    # target exponential), so confident logits cause no cancellation.
    tiny = jnp.float32(1e-30)
    e_l_nt = jnp.where(is_true, 0.0, jnp.exp(d_l * inv_tau))          # (TB, C)
    s_l_nt = jnp.maximum(jnp.sum(e_l_nt, axis=1, keepdims=True), tiny)

    m_g = jnp.max(glob, axis=1, keepdims=True)
    d_g = glob - m_g
    e_g_nt = jnp.where(is_true, 0.0, jnp.exp(d_g * inv_tau))          # (TB, C)
    s_g_nt = jnp.maximum(jnp.sum(e_g_nt, axis=1, keepdims=True), tiny)

    # Log-normalizers of the two tau-softened not-true distributions.
    log_z_l = m_all * inv_tau + jnp.log(s_l_nt)
    log_z_g = m_g * inv_tau + jnp.log(s_g_nt)
    zdiff = log_z_g - log_z_l                                        # (TB, 1)

    # KL(global_nt || local_nt) per row:
    #   sum_j p_g_j * [(g_j - l_j)/tau - zdiff] = wsum / (tau * s_g_nt) - zdiff
    # (zdiff factors out because sum_j p_g_j == 1), so no full-width `delta`
    # tensor and no extra select are needed (e_g_nt is already 0 at the target).
    wsum = jnp.sum(e_g_nt * (glob - local), axis=1, keepdims=True)   # (TB, 1)
    kl_row = inv_tau * wsum * pl.reciprocal(s_g_nt, approx=False) - zdiff

    # --------------- Mask out-of-batch rows and reduce the tile --------------
    row_idx = i * TB + jax.lax.broadcasted_iota(jnp.int32, (TB, 1), 0)
    per_row = ce_row + jnp.float32(beta * tau * tau) * kl_row
    tile_loss = jnp.sum(jnp.where(row_idx < batch_total, per_row, 0.0))
    out_ref[0, 0] = tile_loss


def ntd_loss(local_logits, targets, global_logits, *, tau=TAU, beta=BETA,
             tile_b=1024):
    B, C = local_logits.shape
    assert global_logits.shape == (B, C)

    # Batch tile: multiple of 16 (clean sublane tiling for f32 and bf16), and
    # capped at max(256, cdiv(B, 4)) so large batches always give >= 4 grid
    # tiles for the "parallel" axis (both v7x TensorCores stay busy) while
    # small batches stay a single DMA.  Edge rows are masked in-kernel, so no
    # batch padding is needed; the class axis is a full-dim block (C == 200).
    TB = min(int(tile_b), max(256, pl.cdiv(B, 4)))
    TB = min(TB, B)
    TB = max(16, ((TB + 15) // 16) * 16)
    n_tiles = pl.cdiv(B, TB)

    tgt2d = targets.astype(jnp.int32).reshape(B, 1)

    kernel = functools.partial(ntd_loss_kernel, tau=float(tau),
                               beta=float(beta), batch_total=B)

    partials = pl.pallas_call(
        kernel,
        out_shape=jax.ShapeDtypeStruct((n_tiles, 1), jnp.float32),
        grid=(n_tiles,),
        in_specs=[
            pl.BlockSpec((TB, C), lambda i: (i, 0)),
            pl.BlockSpec((TB, C), lambda i: (i, 0)),
            pl.BlockSpec((TB, 1), lambda i: (i, 0)),
        ],
        out_specs=pl.BlockSpec((1, 1), lambda i: (i, 0),
                               memory_space=pltpu.MemorySpace.SMEM),
        compiler_params=pltpu.CompilerParams(
            dimension_semantics=("parallel",),
            vmem_limit_bytes=48 * 1024 * 1024),
    )(local_logits, global_logits, tgt2d)

    # Both CE ('mean') and KLDiv ('batchmean') normalize by B (done once here).
    return jnp.sum(partials) / B


def ntd_loss_ref(local, targets, glob, num_classes=NUM_CLASSES, tau=TAU, beta=BETA):
    """Pure-numpy reference matching the PyTorch forward exactly."""
    local = np.asarray(local, np.float32)
    glob = np.asarray(glob, np.float32)
    targets = np.asarray(targets, np.int64)
    B = local.shape[0]

    # CrossEntropyLoss (mean)
    m = local.max(axis=1, keepdims=True)
    lse = np.log(np.exp(local - m).sum(axis=1, keepdims=True)) + m
    ce = np.mean(lse[np.arange(B), 0] - local[np.arange(B), targets])

    # _refine_as_not_true: drop the target column
    col = np.tile(np.arange(num_classes)[None, :], (B, 1))
    mask = col != targets[:, None]
    lnt = local[mask].reshape(B, num_classes - 1) / tau
    gnt = glob[mask].reshape(B, num_classes - 1) / tau

    lm = lnt.max(axis=1, keepdims=True)
    l_logprob = (lnt - lm) - np.log(np.exp(lnt - lm).sum(axis=1, keepdims=True))
    gm = gnt.max(axis=1, keepdims=True)
    ge = np.exp(gnt - gm)
    gp = ge / ge.sum(axis=1, keepdims=True)
    g_logprob = (gnt - gm) - np.log(ge.sum(axis=1, keepdims=True))

    kl = np.sum(gp * (g_logprob - l_logprob)) / B
    return ce + beta * tau * tau * kl


if __name__ == "__main__":
    C = NUM_CLASSES

    # Case 1: small batch, single tile, f32.
    k1, k2, k3 = jax.random.split(jax.random.PRNGKey(0), 3)
    B = 8
    local_logits = jax.random.normal(k1, (B, C), dtype=jnp.float32)
    global_logits = jax.random.normal(k2, (B, C), dtype=jnp.float32)
    targets = jax.random.randint(k3, (B,), 0, C, dtype=jnp.int32)

    loss = jax.block_until_ready(ntd_loss(local_logits, targets, global_logits))
    ref = ntd_loss_ref(local_logits, targets, global_logits)
    np.testing.assert_allclose(np.asarray(loss), ref, rtol=1e-4, atol=1e-4)

    # Case 2: batch not a multiple of the tile -> multi-tile grid + partial
    # last block + in-kernel edge-row masking (no wrapper padding).
    k4, k5, k6 = jax.random.split(jax.random.PRNGKey(1), 3)
    B2 = 20
    local2 = jax.random.normal(k4, (B2, C), dtype=jnp.float32)
    global2 = jax.random.normal(k5, (B2, C), dtype=jnp.float32)
    targets2 = jax.random.randint(k6, (B2,), 0, C, dtype=jnp.int32)

    loss2 = jax.block_until_ready(ntd_loss(local2, targets2, global2, tile_b=16))
    ref2 = ntd_loss_ref(local2, targets2, global2)
    np.testing.assert_allclose(np.asarray(loss2), ref2, rtol=1e-4, atol=1e-4)

    # Case 3: confident logits (target column dominates) -> exercises the
    # numerically-robust masked not-true normalizers.
    k7, k8, k9 = jax.random.split(jax.random.PRNGKey(2), 3)
    B3 = 16
    targets3 = jax.random.randint(k9, (B3,), 0, C, dtype=jnp.int32)
    onehot3 = jax.nn.one_hot(targets3, C, dtype=jnp.float32)
    local3 = jax.random.normal(k7, (B3, C), dtype=jnp.float32) + 25.0 * onehot3
    global3 = jax.random.normal(k8, (B3, C), dtype=jnp.float32) + 30.0 * onehot3

    loss3 = jax.block_until_ready(ntd_loss(local3, targets3, global3))
    ref3 = ntd_loss_ref(local3, targets3, global3)
    np.testing.assert_allclose(np.asarray(loss3), ref3, rtol=1e-4, atol=1e-4)

    # Case 4: bf16 logits end-to-end (halved HBM read traffic); in-kernel f32
    # upcast keeps the math in f32.
    k10, k11, k12 = jax.random.split(jax.random.PRNGKey(3), 3)
    B4 = 32
    local4 = jax.random.normal(k10, (B4, C), dtype=jnp.bfloat16)
    global4 = jax.random.normal(k11, (B4, C), dtype=jnp.bfloat16)
    targets4 = jax.random.randint(k12, (B4,), 0, C, dtype=jnp.int32)

    loss4 = jax.block_until_ready(ntd_loss(local4, targets4, global4))
    ref4 = ntd_loss_ref(np.asarray(local4.astype(jnp.float32)),
                        targets4,
                        np.asarray(global4.astype(jnp.float32)))
    np.testing.assert_allclose(np.asarray(loss4), ref4, rtol=1e-4, atol=1e-4)

    print("KERNEL_OK")
</pallas_src>

<mosaic_0001>
module attributes {stable_mosaic.version = 11 : i64} {
  func.func @ntd_loss_kernel(%arg0: i32, %arg1: memref<16x200xf32, #tpu.memory_space<vmem>>, %arg2: memref<16x200xf32, #tpu.memory_space<vmem>>, %arg3: memref<16x1xi32, #tpu.memory_space<vmem>>, %arg4: memref<1x1xf32, #tpu.memory_space<smem>>) attributes {dimension_semantics = [#tpu.dimension_semantics<parallel>], iteration_bounds = array<i64: 1>, scalar_prefetch = 0 : i64, scratch_operands = 0 : i64, tpu.core_type = #tpu.core_type<tc>, window_params = [{transform_indices = @transform_0, window_bounds = array<i64: 16, 200>}, {transform_indices = @transform_1, window_bounds = array<i64: 16, 200>}, {transform_indices = @transform_2, window_bounds = array<i64: 16, 1>}, {transform_indices = @transform_3, window_bounds = array<i64: 1, 1>}]} {
    %c0 = arith.constant 0 : index
    %c0_0 = arith.constant 0 : index
    %0 = vector.load %arg1[%c0, %c0_0] : memref<16x200xf32, #tpu.memory_space<vmem>>, vector<16x200xf32>
    %c0_1 = arith.constant 0 : index
    %c0_2 = arith.constant 0 : index
    %1 = vector.load %arg2[%c0_1, %c0_2] : memref<16x200xf32, #tpu.memory_space<vmem>>, vector<16x200xf32>
    %c0_3 = arith.constant 0 : index
    %c0_4 = arith.constant 0 : index
    %2 = vector.load %arg3[%c0_3, %c0_4] : memref<16x1xi32, #tpu.memory_space<vmem>>, vector<16x1xi32>
    %3 = tpu.iota {dimensions = array<i32: 1>} : vector<16x200xi32>
    %4 = vector.broadcast %2 : vector<16x1xi32> to vector<16x200xi32>
    %5 = arith.cmpi eq, %3, %4 : vector<16x200xi32>
    %cst = arith.constant 0.000000e+00 : f32
    %6 = vector.broadcast %cst : f32 to vector<16x200xf32>
    %7 = arith.select %5, %0, %6 : vector<16x200xi1>, vector<16x200xf32>
    %cst_5 = arith.constant dense<0.000000e+00> : vector<16xf32>
    %8 = vector.multi_reduction <add>, %7, %cst_5 [1] : vector<16x200xf32> to vector<16xf32>
    %9 = vector.shape_cast %8 : vector<16xf32> to vector<16x1xf32>
    %cst_6 = arith.constant dense<0xFF800000> : vector<16xf32>
    %10 = vector.multi_reduction <maximumf>, %0, %cst_6 [1] : vector<16x200xf32> to vector<16xf32>
    %11 = vector.shape_cast %10 : vector<16xf32> to vector<16x1xf32>
    %12 = vector.broadcast %11 : vector<16x1xf32> to vector<16x200xf32>
    %13 = arith.subf %0, %12 : vector<16x200xf32>
    %14 = math.exp %13 : vector<16x200xf32>
    %cst_7 = arith.constant dense<0.000000e+00> : vector<16xf32>
    %15 = vector.multi_reduction <add>, %14, %cst_7 [1] : vector<16x200xf32> to vector<16xf32>
    %16 = vector.shape_cast %15 : vector<16xf32> to vector<16x1xf32>
    %17 = math.log %16 : vector<16x1xf32>
    %18 = arith.addf %11, %17 : vector<16x1xf32>
    %19 = arith.subf %18, %9 : vector<16x1xf32>
    %cst_8 = arith.constant 0.333333343 : f32
    %20 = vector.broadcast %cst_8 : f32 to vector<16x200xf32>
    %21 = arith.mulf %13, %20 : vector<16x200xf32>
    %22 = math.exp %21 : vector<16x200xf32>
    %cst_9 = arith.constant 0.000000e+00 : f32
    %23 = vector.broadcast %cst_9 : f32 to vector<16x200xf32>
    %24 = arith.select %5, %23, %22 : vector<16x200xi1>, vector<16x200xf32>
    %cst_10 = arith.constant dense<0.000000e+00> : vector<16xf32>
    %25 = vector.multi_reduction <add>, %24, %cst_10 [1] : vector<16x200xf32> to vector<16xf32>
    %26 = vector.shape_cast %25 : vector<16xf32> to vector<16x1xf32>
    %cst_11 = arith.constant 1.000000e-30 : f32
    %27 = vector.broadcast %cst_11 : f32 to vector<16x1xf32>
    %28 = arith.maximumf %26, %27 : vector<16x1xf32>
    %cst_12 = arith.constant dense<0xFF800000> : vector<16xf32>
    %29 = vector.multi_reduction <maximumf>, %1, %cst_12 [1] : vector<16x200xf32> to vector<16xf32>
    %30 = vector.shape_cast %29 : vector<16xf32> to vector<16x1xf32>
    %31 = vector.broadcast %30 : vector<16x1xf32> to vector<16x200xf32>
    %32 = arith.subf %1, %31 : vector<16x200xf32>
    %cst_13 = arith.constant 0.333333343 : f32
    %33 = vector.broadcast %cst_13 : f32 to vector<16x200xf32>
    %34 = arith.mulf %32, %33 : vector<16x200xf32>
    %35 = math.exp %34 : vector<16x200xf32>
    %cst_14 = arith.constant 0.000000e+00 : f32
    %36 = vector.broadcast %cst_14 : f32 to vector<16x200xf32>
    %37 = arith.select %5, %36, %35 : vector<16x200xi1>, vector<16x200xf32>
    %cst_15 = arith.constant dense<0.000000e+00> : vector<16xf32>
    %38 = vector.multi_reduction <add>, %37, %cst_15 [1] : vector<16x200xf32> to vector<16xf32>
    %39 = vector.shape_cast %38 : vector<16xf32> to vector<16x1xf32>
    %cst_16 = arith.constant 1.000000e-30 : f32
    %40 = vector.broadcast %cst_16 : f32 to vector<16x1xf32>
    %41 = arith.maximumf %39, %40 : vector<16x1xf32>
    %cst_17 = arith.constant 0.333333343 : f32
    %42 = vector.broadcast %cst_17 : f32 to vector<16x1xf32>
    %43 = arith.mulf %11, %42 : vector<16x1xf32>
    %44 = math.log %28 : vector<16x1xf32>
    %45 = arith.addf %43, %44 : vector<16x1xf32>
    %cst_18 = arith.constant 0.333333343 : f32
    %46 = vector.broadcast %cst_18 : f32 to vector<16x1xf32>
    %47 = arith.mulf %30, %46 : vector<16x1xf32>
    %48 = math.log %41 : vector<16x1xf32>
    %49 = arith.addf %47, %48 : vector<16x1xf32>
    %50 = arith.subf %49, %45 : vector<16x1xf32>
    %51 = arith.subf %1, %0 : vector<16x200xf32>
    %52 = arith.mulf %37, %51 : vector<16x200xf32>
    %cst_19 = arith.constant dense<0.000000e+00> : vector<16xf32>
    %53 = vector.multi_reduction <add>, %52, %cst_19 [1] : vector<16x200xf32> to vector<16xf32>
    %54 = vector.shape_cast %53 : vector<16xf32> to vector<16x1xf32>
    %cst_20 = arith.constant 0.333333343 : f32
    %55 = vector.broadcast %cst_20 : f32 to vector<16x1xf32>
    %56 = arith.mulf %55, %54 : vector<16x1xf32>
    %57 = tpu.reciprocal %41 : vector<16x1xf32> -> vector<16x1xf32>
    %58 = arith.mulf %56, %57 : vector<16x1xf32>
    %59 = arith.subf %58, %50 : vector<16x1xf32>
    %c16_i32 = arith.constant 16 : i32
    %60 = arith.muli %arg0, %c16_i32 : i32
    %61 = tpu.iota {dimensions = array<i32: 0>} : vector<16x1xi32>
    %62 = vector.broadcast %60 : i32 to vector<16x1xi32>
    %63 = arith.addi %62, %61 : vector<16x1xi32>
    %cst_21 = arith.constant 9.000000e+00 : f32
    %64 = vector.broadcast %cst_21 : f32 to vector<16x1xf32>
    %65 = arith.mulf %64, %59 : vector<16x1xf32>
    %66 = arith.addf %19, %65 : vector<16x1xf32>
    %c8_i32 = arith.constant 8 : i32
    %67 = vector.broadcast %c8_i32 : i32 to vector<16x1xi32>
    %68 = arith.cmpi slt, %63, %67 : vector<16x1xi32>
    %cst_22 = arith.constant 0.000000e+00 : f32
    %69 = vector.broadcast %cst_22 : f32 to vector<16x1xf32>
    %70 = arith.select %68, %66, %69 : vector<16x1xi1>, vector<16x1xf32>
    %71 = vector.shape_cast %70 : vector<16x1xf32> to vector<1x16x1xf32>
    %cst_23 = arith.constant dense<0.000000e+00> : vector<1xf32>
    %72 = vector.multi_reduction <add>, %71, %cst_23 [1, 2] : vector<1x16x1xf32> to vector<1xf32>
    %73 = vector.shape_cast %72 : vector<1xf32> to vector<1x1x1xf32>
    %74 = vector.extract %73[0, 0, 0] : f32 from vector<1x1x1xf32>
    %c0_24 = arith.constant 0 : index
    %c0_25 = arith.constant 0 : index
    %75 = memref.load %arg4[%c0_24, %c0_25] : memref<1x1xf32, #tpu.memory_space<smem>>
    memref.store %74, %arg4[%c0_24, %c0_25] : memref<1x1xf32, #tpu.memory_space<smem>>
    return
  }
  func.func @transform_0(%arg0: i32) -> (i32, i32) {
    %c0_i32 = arith.constant 0 : i32
    %c0_i32_0 = arith.constant 0 : i32
    return %arg0, %c0_i32 : i32, i32
  }
  func.func @transform_1(%arg0: i32) -> (i32, i32) {
    %c0_i32 = arith.constant 0 : i32
    %c0_i32_0 = arith.constant 0 : i32
    return %arg0, %c0_i32 : i32, i32
  }
  func.func @transform_2(%arg0: i32) -> (i32, i32) {
    %c0_i32 = arith.constant 0 : i32
    %c0_i32_0 = arith.constant 0 : i32
    return %arg0, %c0_i32 : i32, i32
  }
  func.func @transform_3(%arg0: i32) -> (i32, i32) {
    %c0_i32 = arith.constant 0 : i32
    %c0_i32_0 = arith.constant 0 : i32
    return %arg0, %c0_i32 : i32, i32
  }
}

</mosaic_0001>

<llo_original>
// kernel: tpu_custom_call.1
$region0: #{tpu_custom_call.1}
  #allocation0 [shape = 'u32[]', space=smem, size = 0x4, offset = 0x4, fixed_abs, tag = 'smem constant byte address 0x4 - core index']
  #allocation1 [shape = 'u32[144,128]{1,0:T(1,128)}', space=vmem, size = 0x12000, scoped, tag = 'internal scratch']
  %s0 = inlined_call_operand.hbm [shape: f32[8,200], index: 0, kind: input, shape index: {}]
  %s1 = inlined_call_operand.hbm [shape: f32[8,200], index: 1, kind: input, shape index: {}]
  %s2 = inlined_call_operand.vmem [shape: s32[8,1], index: 2, kind: input, shape index: {}]
  %s3 = inlined_call_operand.hbm [shape: f32[1,1], index: 3, kind: output, shape index: {}]
  %s4 = sld [smem:[#allocation0]]
  $region30: #{tpu_custom_call.1} parent=0
    _
  %s6 = ssub.s32 1, %s4
  %s7 = scalar_select 0, %s6, %s4
  $region1: #{tpu_custom_call.1} parent=0
    #allocation2 [shape = 'u8[16384]{0}', space=vmem, size = 0x4000, scoped, tag = 'input window, operand 0, single buffered']
    #allocation3 [shape = 's32[1]{0}', space=sflag, size = 0x4, scoped, tag = 'scoped memory for tpu_custom_call.1']
    #allocation4 [shape = 's32[1]{0}', space=sflag, size = 0x4, scoped, tag = 'scoped memory for tpu_custom_call.1']
    #allocation5 [shape = 'u8[16384]{0}', space=vmem, size = 0x4000, scoped, tag = 'input window, operand 1, single buffered']
    #allocation6 [shape = 's32[1]{0}', space=sflag, size = 0x4, scoped, tag = 'scoped memory for tpu_custom_call.1']
    #allocation7 [shape = 'u8[512]{0}', space=smem, size = 0x200, scoped, tag = 'output window, operand 0, single buffered']
    %8 = vsyncpa [#allocation3], 0
    %9 = vsyncpa [#allocation6], 0
    %10 = vsyncpa [#allocation4], 0
    // Predicated region
    $region2: #{tpu_custom_call.1} parent=1 // pred_check
      _
    $region3: #{tpu_custom_call.1} parent=1 // pred_check_branch
      %12 = sbr.rel (0) target = $region5
    $region4: #{tpu_custom_call.1} parent=1 // pred_region
      %s14 = ssub.s32 512, 256
      %15 = vsyncadd [#allocation3], %s14
      %s16 = sshll.u32 [#allocation2], 4
      %s17 = int_to_ptr.vmem [resolvable:$true] %s16
      %22 = dma.hbm_to_vmem [thread:$0]  %s0, 256, %s17, [#allocation3], 256, 256, 16
    $region5: #{tpu_custom_call.1} parent=1 // pred_fallthru
      _
    // Predicated region
    $region6: #{tpu_custom_call.1} parent=1 // pred_check
      _
    $region7: #{tpu_custom_call.1} parent=1 // pred_check_branch
      %24 = sbr.rel (0) target = $region9
    $region8: #{tpu_custom_call.1} parent=1 // pred_region
      %s26 = ssub.s32 512, 256
      %27 = vsyncadd [#allocation6], %s26
      %s28 = sshll.u32 [#allocation5], 4
      %s29 = int_to_ptr.vmem [resolvable:$true] %s28
      %34 = dma.hbm_to_vmem [thread:$0]  %s1, 256, %s29, [#allocation6], 256, 256, 16
    $region9: #{tpu_custom_call.1} parent=1 // pred_fallthru
      _
    // Predicated region
    $region10: #{tpu_custom_call.1} parent=1 // pred_check
      _
    $region11: #{tpu_custom_call.1} parent=1 // pred_check_branch
      %36 = sbr.rel (0) target = $region13
    $region12: #{tpu_custom_call.1} parent=1 // pred_region
      _
    $region13: #{tpu_custom_call.1} parent=1 // pred_fallthru
      _
    // Predicated region
    $region14: #{tpu_custom_call.1} parent=1 // pred_check
      _
    $region15: #{tpu_custom_call.1} parent=1 // pred_check_branch
      %38 = sbr.rel (0) target = $region17
    $region16: #{tpu_custom_call.1} parent=1 // pred_region
      %39 = dma.done [#allocation3], 512
    $region17: #{tpu_custom_call.1} parent=1 // pred_fallthru
      _
    // Predicated region
    $region18: #{tpu_custom_call.1} parent=1 // pred_check
      _
    $region19: #{tpu_custom_call.1} parent=1 // pred_check_branch
      %41 = sbr.rel (0) target = $region21
    $region20: #{tpu_custom_call.1} parent=1 // pred_region
      %42 = dma.done [#allocation6], 512
    $region21: #{tpu_custom_call.1} parent=1 // pred_fallthru
      _
    %v43 = vld [vmem:[#allocation2] sm:$0xff]
    %v44 = vld [vmem:[#allocation2 + $0x8] sm:$0xff]
    %v45 = vld [vmem:[#allocation2 + $0x10] sm:$0xff]
    %v46 = vld [vmem:[#allocation2 + $0x18] sm:$0xff]
    %v47 = vld [vmem:[#allocation5] sm:$0xff]
    %v48 = vld [vmem:[#allocation5 + $0x8] sm:$0xff]
    %v49 = vld [vmem:[#allocation5 + $0x10] sm:$0xff]
    %v50 = vld [vmem:[#allocation5 + $0x18] sm:$0xff]
    %v51 = vld [vmem:[%s2] sm:$0xff]
    %v52 = vld [vmem:[%s2 + $0x8] sm:$0xff]
    %v53 = vlaneseq
    %v54 = vand.u32 %v53, 127
    %v55 = vadd.s32 %v54, 128
    %56 = vset.pattern.permute.xlu0 0
    %57 = vperm.xlu0 %56, %v51
    %v58 = vpop.permute.xlu0 %57
    %59 = vset.pattern.permute.xlu0 0
    %60 = vperm.xlu0 %59, %v52
    %v61 = vpop.permute.xlu0 %60
    %vm62 = vcmp.eq.s32.totalorder %v54, %v58
    %vm63 = vcmp.eq.s32.totalorder %v55, %v58
    %vm64 = vcmp.eq.s32.totalorder %v54, %v61
    %vm65 = vcmp.eq.s32.totalorder %v55, %v61
    %v66 = vsel %vm62, %v43, 0.0
    %v67 = vsel %vm63, %v44, 0.0
    %v68 = vsel %vm64, %v45, 0.0
    %v69 = vsel %vm65, %v46, 0.0
    %vm70 = vcmask 588800
    %v71 = vsel %vm70, %v67, 0.0
    %v72 = vadd.f32 %v66, %v71
    %73 = vadd.xlane.f32.xlu0 %v72
    %v74 = vpop.xlane.xlu0 %73
    %v75 = vsel %vm70, %v69, 0.0
    %v76 = vadd.f32 %v68, %v75
    %77 = vadd.xlane.f32.xlu0 %v76
    %v78 = vpop.xlane.xlu0 %77
    %v79 = vsel %vm70, %v44, -inf
    %v80 = vmax.f32 %v43, %v79
    %81 = vmax.xlane.f32.xlu0 %v80
    %v82 = vpop.xlane.xlu0 %81
    %v83 = vsel %vm70, %v46, -inf
    %v84 = vmax.f32 %v45, %v83
    %85 = vmax.xlane.f32.xlu0 %v84
    %v86 = vpop.xlane.xlu0 %85
    %v87 = vsub.f32 %v43, %v82
    %v88 = vsub.f32 %v44, %v82
    %v89 = vsub.f32 %v45, %v86
    %v90 = vsub.f32 %v46, %v86
    %v91 = vmul.f32 %v87, 1.442695
    %v92 = vpow.pop %v91
    %v93 = vmul.f32 %v88, 1.442695
    %v94 = vpow.pop %v93
    %v95 = vmul.f32 %v89, 1.442695
    %v96 = vpow.pop %v95
    %v97 = vmul.f32 %v90, 1.442695
    %v98 = vpow.pop %v97
    %v99 = vsel %vm70, %v94, 0.0
    %v100 = vadd.f32 %v92, %v99
    %101 = vadd.xlane.f32.xlu0 %v100
    %v102 = vpop.xlane.xlu0 %101
    %v103 = vsel %vm70, %v98, 0.0
    %v104 = vadd.f32 %v96, %v103
    %105 = vadd.xlane.f32.xlu0 %v104
    %v106 = vpop.xlane.xlu0 %105
    %v107 = vlog2.pop %v102
    %v108 = vmul.f32 %v107, 0.6931472
    %v109 = vlog2.pop %v106
    %v110 = vmul.f32 %v109, 0.6931472
    %v111 = vadd.f32 %v82, %v108
    %v112 = vadd.f32 %v86, %v110
    %v113 = vsub.f32 %v111, %v74
    %v114 = vsub.f32 %v112, %v78
    %v115 = vmul.f32 %v87, 0.33333334
    %v116 = vmul.f32 %v88, 0.33333334
    %v117 = vmul.f32 %v89, 0.33333334
    %v118 = vmul.f32 %v90, 0.33333334
    %v119 = vmul.f32 %v115, 1.442695
    %v120 = vpow.pop %v119
    %v121 = vmul.f32 %v116, 1.442695
    %v122 = vpow.pop %v121
    %v123 = vmul.f32 %v117, 1.442695
    %v124 = vpow.pop %v123
    %v125 = vmul.f32 %v118, 1.442695
    %v126 = vpow.pop %v125
    %v127 = vsel %vm62, 0.0, %v120
    %v128 = vsel %vm63, 0.0, %v122
    %v129 = vsel %vm64, 0.0, %v124
    %v130 = vsel %vm65, 0.0, %v126
    %v131 = vsel %vm70, %v128, 0.0
    %v132 = vadd.f32 %v127, %v131
    %133 = vadd.xlane.f32.xlu0 %v132
    %v134 = vpop.xlane.xlu0 %133
    %v135 = vsel %vm70, %v130, 0.0
    %v136 = vadd.f32 %v129, %v135
    %137 = vadd.xlane.f32.xlu0 %v136
    %v138 = vpop.xlane.xlu0 %137
    %v139 = vmax.f32 %v134, 1e-30
    %v140 = vmax.f32 %v138, 1e-30
    %v141 = vsel %vm70, %v48, -inf
    %v142 = vmax.f32 %v47, %v141
    %143 = vmax.xlane.f32.xlu0 %v142
    %v144 = vpop.xlane.xlu0 %143
    %v145 = vsel %vm70, %v50, -inf
    %v146 = vmax.f32 %v49, %v145
    %147 = vmax.xlane.f32.xlu0 %v146
    %v148 = vpop.xlane.xlu0 %147
    %v149 = vsub.f32 %v47, %v144
    %v150 = vsub.f32 %v48, %v144
    %v151 = vsub.f32 %v49, %v148
    %v152 = vsub.f32 %v50, %v148
    %v153 = vmul.f32 %v149, 0.33333334
    %v154 = vmul.f32 %v150, 0.33333334
    %v155 = vmul.f32 %v151, 0.33333334
    %v156 = vmul.f32 %v152, 0.33333334
    %v157 = vmul.f32 %v153, 1.442695
    %v158 = vpow.pop %v157
    %v159 = vmul.f32 %v154, 1.442695
    %v160 = vpow.pop %v159
    %v161 = vmul.f32 %v155, 1.442695
    %v162 = vpow.pop %v161
    %v163 = vmul.f32 %v156, 1.442695
    %v164 = vpow.pop %v163
    %v165 = vsel %vm62, 0.0, %v158
    %v166 = vsel %vm63, 0.0, %v160
    %v167 = vsel %vm64, 0.0, %v162
    %v168 = vsel %vm65, 0.0, %v164
    %v169 = vsel %vm70, %v166, 0.0
    %v170 = vadd.f32 %v165, %v169
    %171 = vadd.xlane.f32.xlu0 %v170
    %v172 = vpop.xlane.xlu0 %171
    %v173 = vsel %vm70, %v168, 0.0
    %v174 = vadd.f32 %v167, %v173
    %175 = vadd.xlane.f32.xlu0 %v174
    %v176 = vpop.xlane.xlu0 %175
    %v177 = vmax.f32 %v172, 1e-30
    %v178 = vmax.f32 %v176, 1e-30
    %v179 = vmul.f32 %v82, 0.33333334
    %v180 = vmul.f32 %v86, 0.33333334
    %v181 = vlog2.pop %v139
    %v182 = vmul.f32 %v181, 0.6931472
    %v183 = vlog2.pop %v140
    %v184 = vmul.f32 %v183, 0.6931472
    %v185 = vadd.f32 %v179, %v182
    %v186 = vadd.f32 %v180, %v184
    %v187 = vmul.f32 %v144, 0.33333334
    %v188 = vmul.f32 %v148, 0.33333334
    %v189 = vlog2.pop %v177
    %v190 = vmul.f32 %v189, 0.6931472
    %v191 = vlog2.pop %v178
    %v192 = vmul.f32 %v191, 0.6931472
    %v193 = vadd.f32 %v187, %v190
    %v194 = vadd.f32 %v188, %v192
    %v195 = vsub.f32 %v193, %v185
    %v196 = vsub.f32 %v194, %v186
    %v197 = vsub.f32 %v47, %v43
    %v198 = vsub.f32 %v48, %v44
    %v199 = vsub.f32 %v49, %v45
    %v200 = vsub.f32 %v50, %v46
    %v201 = vmul.f32 %v165, %v197
    %v202 = vmul.f32 %v166, %v198
    %v203 = vmul.f32 %v167, %v199
    %v204 = vmul.f32 %v168, %v200
    %v205 = vsel %vm70, %v202, 0.0
    %v206 = vadd.f32 %v201, %v205
    %207 = vadd.xlane.f32.xlu0 %v206
    %v208 = vpop.xlane.xlu0 %207
    %v209 = vsel %vm70, %v204, 0.0
    %v210 = vadd.f32 %v203, %v209
    %211 = vadd.xlane.f32.xlu0 %v210
    %v212 = vpop.xlane.xlu0 %211
    %v213 = vmul.f32 %v208, 0.33333334
    %v214 = vmul.f32 %v212, 0.33333334
    %v215 = vrcp.pop %v177
    %v216 = vrcp.pop %v178
    %v217 = vmul.f32 %v213, %v215
    %v218 = vmul.f32 %v214, %v216
    %v219 = vsub.f32 %v217, %v195
    %v220 = vsub.f32 %v218, %v196
    %s221 = smul.u32 0, 16
    %v222 = vlaneseq
    %v223 = vshrl.u32 %v222, 7
    %v224 = vadd.s32 %v223, 8
    %v225 = vstv %s221
    %v226 = vadd.s32 %v225, %v223
    %v227 = vadd.s32 %v225, %v224
    %v228 = vmul.f32 %v219, 9.0
    %v229 = vmul.f32 %v220, 9.0
    %v230 = vadd.f32 %v113, %v228
    %v231 = vadd.f32 %v114, %v229
    %vm232 = vcmp.lt.s32.totalorder %v226, 8
    %vm233 = vcmp.lt.s32.totalorder %v227, 8
    %v234 = vsel %vm232, %v230, 0.0
    %v235 = vsel %vm233, %v231, 0.0
    %vm236 = vcmask 7168
    %v237 = vsel %vm236, %v234, 0.0
    %v238 = vsel %vm236, %v235, 0.0
    %v239 = vadd.f32 %v237, %v238
    %240 = vadd.xlane.f32.xlu0 %v239
    %v241 = vpop.xlane.xlu0 %240
    %v242 = vrot.slane %v241, 4
    %v243 = vadd.f32 %v241, %v242
    %v244 = vrot.slane %v243, 2
    %v245 = vadd.f32 %v243, %v244
    %v246 = vrot.slane %v245, 1
    %v247 = vadd.f32 %v245, %v246
    %s248 = vtos %v247
    %s249 = scalar_lea.smem [#allocation7], 0
    %250 = sst [smem:[%s249]] %s248
    // Predicated region
    $region22: #{tpu_custom_call.1} parent=1 // pred_check
      _
    $region23: #{tpu_custom_call.1} parent=1 // pred_check_branch
      %252 = sbr.rel (0) target = $region25
    $region24: #{tpu_custom_call.1} parent=1 // pred_region
      %s254 = ssub.s32 16, 16
      %255 = vsyncadd [#allocation4], %s254
      %258 = dma.smem_to_hbm [#allocation7], 16, %s3, [#allocation4]
    $region25: #{tpu_custom_call.1} parent=1 // pred_fallthru
      _
    // Predicated region
    $region26: #{tpu_custom_call.1} parent=1 // pred_check
      _
    $region27: #{tpu_custom_call.1} parent=1 // pred_check_branch
      %260 = sbr.rel (0) target = $region29
    $region28: #{tpu_custom_call.1} parent=1 // pred_region
      %261 = dma.done [#allocation4], 16
    $region29: #{tpu_custom_call.1} parent=1 // pred_fallthru
      _
    %262 = sfence
    %263 = vsyncpa [#allocation3], 1
    %264 = vsyncpa [#allocation6], 1
    %265 = vsyncpa [#allocation4], 1

</llo_original>
